<compile_context>
chip_gen: v7x
topology: tpu7x:2x2x1
jax: 0.10.0
libtpu: 0.0.40
codegen_flags: <defaults>
</compile_context>

<pallas_src>
import functools

import jax
import jax.numpy as jnp
from jax.experimental import pallas as pl
from jax.experimental.pallas import tpu as pltpu

F32 = jnp.float32
BF16 = jnp.bfloat16


def _round_up(v, m):
    return ((v + m - 1) // m) * m


def _pad_axis(a, axis, target):
    pad = int(target) - a.shape[axis]
    if pad <= 0:
        return a
    widths = [(0, 0)] * a.ndim
    widths[axis] = (0, pad)
    return jnp.pad(a, widths)


# --------------------------------------------------------------------------
# Kernel 1 (fused encoder): Linear -> 2x DeepGCNLayer('res+') with GATConv.
#   per layer: h = BN(x); h = LeakyReLU(h); h = dropout(h)[identity];
#              h = GAT(h, A); x = x + h
# Everything (x, xp, adjacency bias) stays in VMEM across both layers.
# --------------------------------------------------------------------------
def _encoder_kernel(x_ref, bias_ref, lw_ref, lb_ref, colmask_ref,
                    g1_ref, b1_ref, w1_ref, as1_ref, gb1_ref,
                    g2_ref, b2_ref, w2_ref, as2_ref, gb2_ref,
                    o_ref, *, hid):
    dn = (((1,), (1,)), ((), ()))
    adj_bias = bias_ref[...]          # [N, N] bf16 additive mask: 0 on edges, -1e30 off
    colmask = colmask_ref[...]        # [1, hid_pad]: 1 on real channels, 0 on pad/fold lanes

    # self.lin : x @ W^T + b   (W pre-transposed, zero-padded, bf16 in the wrapper)
    x = jnp.dot(x_ref[...].astype(BF16), lw_ref[...],
                preferred_element_type=F32) + lb_ref[...]

    def deepgcn_gat(x, gamma, beta, wg_aug, att_src, gbias):
        # BatchNorm1d, training-mode batch statistics (f32)
        mean = jnp.mean(x, axis=0, keepdims=True)
        var = jnp.mean((x - mean) ** 2, axis=0, keepdims=True)
        h = (x - mean) * jax.lax.rsqrt(var + 1e-5) * gamma + beta
        # nn.LeakyReLU default slope 0.01
        h = jnp.where(h >= 0.0, h, 0.01 * h)
        # dropout: eval-mode identity

        # GATConv projection on the MXU (bf16 operands, f32 accumulate).
        # wg_aug has att_dst folded into output lane `hid`, so a_dst is a slice
        # (no extra MXU matvec).  a_src stays a tiny dot_general (transpose-free).
        xp = jnp.dot(h.astype(BF16), wg_aug, preferred_element_type=F32)   # [N, hid_pad]
        a_dst = xp[:, hid:hid + 1]                                          # [N, 1]
        a_src = jax.lax.dot_general(att_src, xp, dn,
                                    preferred_element_type=F32)             # [1, N]
        xp = xp * colmask                            # zero the folded / padded lanes
        e = a_dst + a_src                            # e[i, j] = a_dst[i] + a_src[j]
        e = jnp.where(e >= 0.0, e, 0.2 * e)          # GAT leaky-relu slope 0.2
        e = e + adj_bias                             # additive mask (bf16 promotes to f32)
        e = e - jnp.max(e, axis=-1, keepdims=True)   # self-loops -> finite row max
        p = jnp.exp(e)                               # masked entries -> exactly 0
        # softmax normalization via EUP reciprocal (attention only, not KL-critical)
        alpha = p * pl.reciprocal(jnp.sum(p, axis=-1, keepdims=True), approx=True)
        gat = jnp.dot(alpha.astype(BF16), xp.astype(BF16),
                      preferred_element_type=F32) + gbias
        return x + gat                               # 'res+' residual

    x = deepgcn_gat(x, g1_ref[...], b1_ref[...], w1_ref[...], as1_ref[...], gb1_ref[...])
    x = deepgcn_gat(x, g2_ref[...], b2_ref[...], w2_ref[...], as2_ref[...], gb2_ref[...])
    o_ref[...] = x.astype(o_ref.dtype)               # bf16 store (halves HBM writeback)


def encoder(x, adj, params, hid_pad, in_pad):
    N = x.shape[0]
    hid = params["lin_w"].shape[0]

    x_p = _pad_axis(x.astype(F32), 1, in_pad)                       # lane-dense input
    lw = _pad_axis(_pad_axis(params["lin_w"].T.astype(F32), 0, in_pad),
                   1, hid_pad).astype(BF16)
    lb = _pad_axis(params["lin_b"].reshape(1, hid).astype(F32), 1, hid_pad)
    # additive attention bias: 0 on (self-loop-augmented) edges, -1e30 elsewhere
    bias = jnp.where(adj > 0.0, 0.0, -1e30).astype(BF16)
    colmask = (jnp.arange(hid_pad) < hid).astype(F32).reshape(1, hid_pad)

    def prep(lp):
        wg = lp["gat_w"].T.astype(F32)                              # torch [out,in] -> [in,out]
        a_dst_col = wg @ lp["att_dst"].reshape(hid).astype(F32)     # fold att_dst into lane `hid`
        wg_aug = jnp.zeros((hid_pad, hid_pad), F32)
        wg_aug = wg_aug.at[:hid, :hid].set(wg)
        wg_aug = wg_aug.at[:hid, hid].set(a_dst_col)
        return (
            _pad_axis(lp["bn_gamma"].reshape(1, hid).astype(F32), 1, hid_pad),
            _pad_axis(lp["bn_beta"].reshape(1, hid).astype(F32), 1, hid_pad),
            wg_aug.astype(BF16),
            _pad_axis(lp["att_src"].reshape(1, hid).astype(F32), 1, hid_pad),
            _pad_axis(lp["gat_b"].reshape(1, hid).astype(F32), 1, hid_pad),
        )

    l1 = prep(params["layers"][0])
    l2 = prep(params["layers"][1])

    # Explicit scoped-VMEM limit: defaults (16/32/32 MiB on v5e/v6e/v7x) bind long
    # before physical VMEM.  Live set ~ bf16 bias (2N^2) + a few N^2 f32 attention
    # temporaries + ~[N,128] activations; clamp to stay under v7x's 64 MiB.
    nn = N * N
    est = 2 * nn + 4 * 4 * nn + 12 * N * hid_pad * 4 + 4 * hid_pad * hid_pad * 2 + (2 << 20)
    vmem_limit = int(max(32 << 20, min(est, 56 << 20)))

    # TODO(synk): for large N, row-tile the attention with a "parallel" dst-row grid
    # (>=256-row tiles on v6e/v7x so the 256-wide MXU is full; 128 is native on v5e),
    # recompute the cheap BN stats per tile or in a pre-pass, and gate the crossover
    # on pltpu.get_tpu_info() (v7x: 64 MiB VMEM + 2 TCs -> tile ~2x earlier than v5e/v6e).
    kernel = functools.partial(_encoder_kernel, hid=hid)
    return pl.pallas_call(
        kernel,
        out_shape=jax.ShapeDtypeStruct((N, hid_pad), BF16),
        compiler_params=pltpu.CompilerParams(vmem_limit_bytes=vmem_limit),
    )(x_p, bias, lw, lb, colmask, *l1, *l2)


# --------------------------------------------------------------------------
# Kernel 2: MemPooling (per-graph, grid over batch B) with fused kl_loss.
#   dist -> student-t kernel -> per-head normalize -> 1x1 conv over heads
#   -> softmax over clusters -> mask -> pooled = S @ x -> lin.
# The per-graph KL term is written into an unused zero-padded lane of the
# pooled output (no second output stream / DMA per grid step).
# --------------------------------------------------------------------------
def _mempool_kernel(x_ref, mask_ref, k_ref, m_ref, p_ref, lw_ref, out_ref,
                    *, tau, apply_act, kl_col):
    x = x_ref[0].astype(F32)                                   # [N, C] (input may be bf16)
    if apply_act:
        # F.leaky_relu (slope 0.01); F.dropout -> eval-mode identity
        x = jnp.where(x >= 0.0, x, 0.01 * x)
    xb = x.astype(BF16)
    kc = k_ref[...]                                            # [H*K, C] f32
    C = x.shape[1]
    dn = (((1,), (1,)), ((), ()))
    ksq = jnp.sum(kc * kc, axis=1, keepdims=True)              # [HK, 1]
    # ones @ (x*x) gives [1, N] directly (transpose-free); cheap MXU matvec kept
    # deliberately -- this kernel is not MXU-slot bound at these sizes.
    xsq = jax.lax.dot_general(jnp.ones((1, C), F32), x * x, dn,
                              preferred_element_type=F32)      # [1, N]
    # cdist cross term kept in f32 (bf16 suffers cancellation near memory keys)
    cross = jax.lax.dot_general(kc, x, dn,
                                preferred_element_type=F32)    # [HK, N]
    d2 = jnp.maximum(ksq + xsq - 2.0 * cross, 0.0)             # squared cdist
    if tau == 1.0:
        d = pl.reciprocal(1.0 + d2)                            # exact: feeds kl_loss
    else:
        d = jnp.exp((-(tau + 1.0) / 2.0) * jnp.log(1.0 + d2 / tau))
    # per-head sums / 1x1 head mix: bf16 operands (full-rate MXU), f32 accumulate
    denom = jnp.dot(m_ref[...], d.astype(BF16),
                    preferred_element_type=F32)                # [HK, N]
    s1 = d * pl.reciprocal(denom)                              # exact reciprocal
    sc = jnp.dot(p_ref[...], s1.astype(BF16),
                 preferred_element_type=F32)                   # [K, N]
    sc = sc - jnp.max(sc, axis=0, keepdims=True)               # softmax over clusters
    es = jnp.exp(sc)
    s = es * pl.reciprocal(jnp.sum(es, axis=0, keepdims=True))
    s = s * mask_ref[0]                                        # [K, N] * [1, N]
    pooled = jnp.dot(s.astype(BF16), xb, preferred_element_type=F32)       # [K, C]
    out = jnp.dot(pooled.astype(BF16), lw_ref[...],
                  preferred_element_type=F32)                  # [K, out_pad], lane-dense

    # ---- fused MemPooling.kl_loss (torch S[b] == s.T) ----
    eps = 1e-15
    sum_n = jnp.sum(s, axis=1, keepdims=True)                  # torch S.sum(dim=1)
    p = (s * s) / sum_n
    pden = jnp.sum(p, axis=0, keepdims=True)                   # torch P.sum(dim=2)
    s_col = jnp.sum(s, axis=0, keepdims=True)                  # torch S.sum(dim=2)
    pden = jnp.where(s_col == 0.0, 1.0, pden)
    p = p / pden
    pc = jnp.maximum(p, eps)
    scl = jnp.maximum(s, eps)
    kl = jnp.sum(pc * (jnp.log(pc) - jnp.log(scl)))            # per-graph scalar

    # stash KL into the last (zero-padded) lane of row 0 of the output tile
    row = jax.lax.broadcasted_iota(jnp.int32, out.shape, 0)
    col = jax.lax.broadcasted_iota(jnp.int32, out.shape, 1)
    out_ref[0] = jnp.where((row == 0) & (col == kl_col), kl, out)


def mem_pooling(x_dense, mask, k, conv_w, lin_w, *, tau=1.0, apply_act=False):
    B, N, C = x_dense.shape
    H, K, Ck = k.shape
    out = lin_w.shape[0]
    out_pad = _round_up(out + 1, 128)       # guarantee >=1 spare lane for the fused KL scalar
    kl_col = out_pad - 1

    kc = _pad_axis(k.reshape(H * K, Ck).astype(F32), 1, C)     # zero-pad to match padded C
    hk = jnp.arange(H * K)
    # M[a, b] = 1 if same head (sums clusters within a head); exact in bf16
    M = (hk[:, None] // K == hk[None, :] // K).astype(BF16)
    # P[k, hk] = conv_w[head(hk)] if cluster(hk)==k  (Conv2d(H,1,1,bias=False))
    P = ((jnp.arange(K)[:, None] == (hk[None, :] % K)).astype(F32)
         * conv_w[hk // K][None, :].astype(F32)).astype(BF16)
    # lin (bias-free): zero-pad rows to C and columns to a lane-dense multiple of 128
    lw = _pad_axis(_pad_axis(lin_w.T.astype(F32), 0, C), 1, out_pad).astype(BF16)
    mask3 = mask.reshape(B, 1, N).astype(F32)

    # TODO(synk): when B is large and per-graph N is small, block G graphs per grid
    # step (BlockSpec((G, N, C), ...)) to amortize the ~0.35us per-step overhead.
    kernel = functools.partial(_mempool_kernel, tau=float(tau),
                               apply_act=apply_act, kl_col=kl_col)
    out_all = pl.pallas_call(
        kernel,
        grid=(B,),
        in_specs=[
            pl.BlockSpec((1, N, C), lambda b: (b, 0, 0)),
            pl.BlockSpec((1, 1, N), lambda b: (b, 0, 0)),
            pl.BlockSpec((H * K, C), lambda b: (0, 0)),
            pl.BlockSpec((H * K, H * K), lambda b: (0, 0)),
            pl.BlockSpec((K, H * K), lambda b: (0, 0)),
            pl.BlockSpec((C, out_pad), lambda b: (0, 0)),
        ],
        out_specs=pl.BlockSpec((1, K, out_pad), lambda b: (b, 0, 0)),
        out_shape=jax.ShapeDtypeStruct((B, K, out_pad), F32),
        compiler_params=pltpu.CompilerParams(dimension_semantics=("parallel",)),
    )(x_dense, mask3, kc, M, P, lw)

    kl = out_all[:, 0, kl_col]                                 # per-graph fused KL term
    pooled = out_all.at[:, 0, kl_col].set(0.0)                 # restore the zero pad lane
    return pooled, kl


# --------------------------------------------------------------------------
# Glue (plain JAX): adjacency build, to_dense_batch, parameter init, forward.
# --------------------------------------------------------------------------
def build_adj(edge_index, num_nodes):
    src, dst = edge_index[0], edge_index[1]
    A = jnp.zeros((num_nodes, num_nodes), F32)
    A = A.at[dst, src].set(1.0)                       # A[i, j] = 1 for edge j -> i
    A = A.at[jnp.arange(num_nodes), jnp.arange(num_nodes)].set(1.0)  # add_self_loops
    return A


def to_dense_batch(x, batch, B, Nmax):
    N = x.shape[0]
    one_hot = (batch[:, None] == jnp.arange(B)[None, :]).astype(jnp.int32)
    pos = jnp.cumsum(one_hot, axis=0)[jnp.arange(N), batch] - 1
    xd = jnp.zeros((B, Nmax, x.shape[1]), x.dtype).at[batch, pos].set(x)
    mask = jnp.zeros((B, Nmax), F32).at[batch, pos].set(1.0)
    return xd, mask


def init_params(key, in_c, hid, out_c):
    keys = iter(jax.random.split(key, 32))

    def nrm(shape, scale):
        return (scale * jax.random.normal(next(keys), shape)).astype(F32)

    p = {
        "lin_w": nrm((hid, in_c), 1.0 / jnp.sqrt(in_c)),
        "lin_b": nrm((hid,), 0.1),
        "layers": [],
    }
    for _ in range(2):
        p["layers"].append(dict(
            bn_gamma=(1.0 + nrm((hid,), 0.1)),
            bn_beta=nrm((hid,), 0.1),
            gat_w=nrm((hid, hid), 1.0 / jnp.sqrt(hid)),   # GATConv.lin (bias=False)
            att_src=nrm((hid,), 0.2),
            att_dst=nrm((hid,), 0.2),
            gat_b=nrm((hid,), 0.1),
        ))
    p["mem1"] = dict(k=nrm((5, 10, hid), 1.0),
                     conv_w=nrm((5,), 0.5),               # Conv2d(5,1,1,bias=False)
                     lin_w=nrm((80, hid), 1.0 / jnp.sqrt(hid)))
    p["mem2"] = dict(k=nrm((5, 1, 80), 1.0),
                     conv_w=nrm((5,), 0.5),
                     lin_w=nrm((out_c, 80), 1.0 / jnp.sqrt(80)))
    return p


def mem_pool_forward(params, x, edge_index, batch, *, B, Nmax):
    hid = params["lin_w"].shape[0]
    in_c = params["lin_w"].shape[1]
    hid_pad = _round_up(hid + 1, 128)             # lane-dense hidden dim + att_dst fold slot
    in_pad = _round_up(in_c, 128)                 # lane-dense input feature dim
    out_c = params["mem2"]["lin_w"].shape[0]

    adj = build_adj(edge_index, x.shape[0])
    # Fused: self.lin + 2x DeepGCNLayer('res+') in a single pallas_call (bf16 out).
    h = encoder(x.astype(F32), adj, params, hid_pad, in_pad)   # [num_nodes, hid_pad] bf16

    xd, mask = to_dense_batch(h, batch, B, Nmax)               # bf16 dense node features
    x1, kl1 = mem_pooling(xd, mask,
                          params["mem1"]["k"], params["mem1"]["conv_w"],
                          params["mem1"]["lin_w"], apply_act=False)    # mem1 + kl_loss

    ones_mask = jnp.ones((B, x1.shape[1]), F32)
    # leaky_relu fused into the mem2 kernel (apply_act=True); dropout -> identity.
    # TODO(synk): F.dropout(training=True) between mem1/mem2 is stochastic; identity here.
    x2, kl2 = mem_pooling(x1, ones_mask,
                          params["mem2"]["k"], params["mem2"]["conv_w"],
                          params["mem2"]["lin_w"], apply_act=True)     # mem2 + kl_loss

    logits = x2[:, 0, :out_c]                                  # x.squeeze(1), drop lane padding
    log_probs = jax.nn.log_softmax(logits, axis=-1)            # 8 elements: plain JAX, no launch
    kl = (jnp.sum(kl1) + jnp.sum(kl2)) / B                     # KLDivLoss reduction='batchmean'
    return log_probs, kl


if __name__ == "__main__":
    key = jax.random.PRNGKey(0)
    in_c, hid, out_c = 8, 32, 4
    B, per_graph = 2, 8
    num_nodes = B * per_graph

    kx, kp = jax.random.split(key)
    x = jax.random.normal(kx, (num_nodes, in_c), dtype=F32)
    batch = jnp.repeat(jnp.arange(B, dtype=jnp.int32), per_graph)

    # deterministic bidirectional ring inside each graph
    srcs, dsts = [], []
    for g in range(B):
        off = g * per_graph
        for i in range(per_graph):
            srcs += [off + i, off + (i + 1) % per_graph]
            dsts += [off + (i + 1) % per_graph, off + i]
    edge_index = jnp.array([srcs, dsts], dtype=jnp.int32)

    params = init_params(kp, in_c, hid, out_c)
    log_probs, kl = mem_pool_forward(params, x, edge_index, batch,
                                     B=B, Nmax=per_graph)
    jax.block_until_ready((log_probs, kl))
    assert log_probs.shape == (B, out_c)
    assert kl.shape == ()
    print("KERNEL_OK")
</pallas_src>

<mosaic_0001>
module attributes {stable_mosaic.version = 11 : i64} {
  func.func @_encoder_kernel(%arg0: memref<16x128xf32, #tpu.memory_space<vmem>>, %arg1: memref<16x16xbf16, #tpu.memory_space<vmem>>, %arg2: memref<128x128xbf16, #tpu.memory_space<vmem>>, %arg3: memref<1x128xf32, #tpu.memory_space<vmem>>, %arg4: memref<1x128xf32, #tpu.memory_space<vmem>>, %arg5: memref<1x128xf32, #tpu.memory_space<vmem>>, %arg6: memref<1x128xf32, #tpu.memory_space<vmem>>, %arg7: memref<128x128xbf16, #tpu.memory_space<vmem>>, %arg8: memref<1x128xf32, #tpu.memory_space<vmem>>, %arg9: memref<1x128xf32, #tpu.memory_space<vmem>>, %arg10: memref<1x128xf32, #tpu.memory_space<vmem>>, %arg11: memref<1x128xf32, #tpu.memory_space<vmem>>, %arg12: memref<128x128xbf16, #tpu.memory_space<vmem>>, %arg13: memref<1x128xf32, #tpu.memory_space<vmem>>, %arg14: memref<1x128xf32, #tpu.memory_space<vmem>>, %arg15: memref<16x128xbf16, #tpu.memory_space<vmem>>) attributes {dimension_semantics = [], scalar_prefetch = 0 : i64, scratch_operands = 0 : i64, tpu.core_type = #tpu.core_type<tc>} {
    %c0 = arith.constant 0 : index
    %c0_0 = arith.constant 0 : index
    %0 = vector.load %arg1[%c0, %c0_0] : memref<16x16xbf16, #tpu.memory_space<vmem>>, vector<16x16xbf16>
    %c0_1 = arith.constant 0 : index
    %c0_2 = arith.constant 0 : index
    %1 = vector.load %arg4[%c0_1, %c0_2] : memref<1x128xf32, #tpu.memory_space<vmem>>, vector<1x128xf32>
    %c0_3 = arith.constant 0 : index
    %c0_4 = arith.constant 0 : index
    %2 = vector.load %arg0[%c0_3, %c0_4] : memref<16x128xf32, #tpu.memory_space<vmem>>, vector<16x128xf32>
    %3 = arith.truncf %2 : vector<16x128xf32> to vector<16x128xbf16>
    %c0_5 = arith.constant 0 : index
    %c0_6 = arith.constant 0 : index
    %4 = vector.load %arg2[%c0_5, %c0_6] : memref<128x128xbf16, #tpu.memory_space<vmem>>, vector<128x128xbf16>
    %cst = arith.constant dense<0.000000e+00> : vector<16x128xf32>
    %5 = tpu.matmul %3, %4, %cst {dimension_numbers = #tpu.dot_dimension_numbers<[1], [0], [0], [1], [0, 0, 1, 1], [], []>} : vector<16x128xbf16>, vector<128x128xbf16>, vector<16x128xf32> -> vector<16x128xf32>
    %c0_7 = arith.constant 0 : index
    %c0_8 = arith.constant 0 : index
    %6 = vector.load %arg3[%c0_7, %c0_8] : memref<1x128xf32, #tpu.memory_space<vmem>>, vector<1x128xf32>
    %7 = vector.broadcast %6 : vector<1x128xf32> to vector<16x128xf32>
    %8 = arith.addf %5, %7 : vector<16x128xf32>
    %c0_9 = arith.constant 0 : index
    %c0_10 = arith.constant 0 : index
    %9 = vector.load %arg5[%c0_9, %c0_10] : memref<1x128xf32, #tpu.memory_space<vmem>>, vector<1x128xf32>
    %c0_11 = arith.constant 0 : index
    %c0_12 = arith.constant 0 : index
    %10 = vector.load %arg6[%c0_11, %c0_12] : memref<1x128xf32, #tpu.memory_space<vmem>>, vector<1x128xf32>
    %c0_13 = arith.constant 0 : index
    %c0_14 = arith.constant 0 : index
    %11 = vector.load %arg7[%c0_13, %c0_14] : memref<128x128xbf16, #tpu.memory_space<vmem>>, vector<128x128xbf16>
    %c0_15 = arith.constant 0 : index
    %c0_16 = arith.constant 0 : index
    %12 = vector.load %arg8[%c0_15, %c0_16] : memref<1x128xf32, #tpu.memory_space<vmem>>, vector<1x128xf32>
    %c0_17 = arith.constant 0 : index
    %c0_18 = arith.constant 0 : index
    %13 = vector.load %arg9[%c0_17, %c0_18] : memref<1x128xf32, #tpu.memory_space<vmem>>, vector<1x128xf32>
    %cst_19 = arith.constant dense<0.000000e+00> : vector<128xf32>
    %14 = vector.multi_reduction <add>, %8, %cst_19 [0] : vector<16x128xf32> to vector<128xf32>
    %15 = vector.shape_cast %14 : vector<128xf32> to vector<1x128xf32>
    %cst_20 = arith.constant 1.600000e+01 : f32
    %16 = vector.broadcast %cst_20 : f32 to vector<1x128xf32>
    %17 = arith.divf %15, %16 : vector<1x128xf32>
    %18 = vector.broadcast %17 : vector<1x128xf32> to vector<16x128xf32>
    %19 = arith.subf %8, %18 : vector<16x128xf32>
    %20 = arith.mulf %19, %19 : vector<16x128xf32>
    %cst_21 = arith.constant dense<0.000000e+00> : vector<128xf32>
    %21 = vector.multi_reduction <add>, %20, %cst_21 [0] : vector<16x128xf32> to vector<128xf32>
    %22 = vector.shape_cast %21 : vector<128xf32> to vector<1x128xf32>
    %cst_22 = arith.constant 1.600000e+01 : f32
    %23 = vector.broadcast %cst_22 : f32 to vector<1x128xf32>
    %24 = arith.divf %22, %23 : vector<1x128xf32>
    %25 = vector.broadcast %17 : vector<1x128xf32> to vector<16x128xf32>
    %26 = arith.subf %8, %25 : vector<16x128xf32>
    %cst_23 = arith.constant 9.99999974E-6 : f32
    %27 = vector.broadcast %cst_23 : f32 to vector<1x128xf32>
    %28 = arith.addf %24, %27 : vector<1x128xf32>
    %29 = math.rsqrt %28 : vector<1x128xf32>
    %30 = vector.broadcast %29 : vector<1x128xf32> to vector<16x128xf32>
    %31 = arith.mulf %26, %30 : vector<16x128xf32>
    %32 = vector.broadcast %9 : vector<1x128xf32> to vector<16x128xf32>
    %33 = arith.mulf %31, %32 : vector<16x128xf32>
    %34 = vector.broadcast %10 : vector<1x128xf32> to vector<16x128xf32>
    %35 = arith.addf %33, %34 : vector<16x128xf32>
    %cst_24 = arith.constant 0.000000e+00 : f32
    %36 = vector.broadcast %cst_24 : f32 to vector<16x128xf32>
    %37 = arith.cmpf oge, %35, %36 : vector<16x128xf32>
    %cst_25 = arith.constant 0.00999999977 : f32
    %38 = vector.broadcast %cst_25 : f32 to vector<16x128xf32>
    %39 = arith.mulf %38, %35 : vector<16x128xf32>
    %40 = arith.select %37, %35, %39 : vector<16x128xi1>, vector<16x128xf32>
    %41 = arith.truncf %40 : vector<16x128xf32> to vector<16x128xbf16>
    %cst_26 = arith.constant dense<0.000000e+00> : vector<16x128xf32>
    %42 = tpu.matmul %41, %11, %cst_26 {dimension_numbers = #tpu.dot_dimension_numbers<[1], [0], [0], [1], [0, 0, 1, 1], [], []>} : vector<16x128xbf16>, vector<128x128xbf16>, vector<16x128xf32> -> vector<16x128xf32>
    %43 = vector.extract_strided_slice %42 {offsets = [0, 32], sizes = [16, 1], strides = [1, 1]} : vector<16x128xf32> to vector<16x1xf32>
    %cst_27 = arith.constant dense<0.000000e+00> : vector<1x16xf32>
    %44 = tpu.matmul %12, %42, %cst_27 {dimension_numbers = #tpu.dot_dimension_numbers<[1], [1], [0], [0], [0, 0, 1, 0], [], []>} : vector<1x128xf32>, vector<16x128xf32>, vector<1x16xf32> -> vector<1x16xf32>
    %45 = vector.broadcast %1 : vector<1x128xf32> to vector<16x128xf32>
    %46 = arith.mulf %42, %45 : vector<16x128xf32>
    %47 = vector.broadcast %43 : vector<16x1xf32> to vector<16x16xf32>
    %48 = vector.broadcast %44 : vector<1x16xf32> to vector<16x16xf32>
    %49 = arith.addf %47, %48 : vector<16x16xf32>
    %cst_28 = arith.constant 0.000000e+00 : f32
    %50 = vector.broadcast %cst_28 : f32 to vector<16x16xf32>
    %51 = arith.cmpf oge, %49, %50 : vector<16x16xf32>
    %cst_29 = arith.constant 2.000000e-01 : f32
    %52 = vector.broadcast %cst_29 : f32 to vector<16x16xf32>
    %53 = arith.mulf %52, %49 : vector<16x16xf32>
    %54 = arith.select %51, %49, %53 : vector<16x16xi1>, vector<16x16xf32>
    %55 = arith.extf %0 : vector<16x16xbf16> to vector<16x16xf32>
    %56 = arith.addf %54, %55 : vector<16x16xf32>
    %cst_30 = arith.constant dense<0xFF800000> : vector<16xf32>
    %57 = vector.multi_reduction <maximumf>, %56, %cst_30 [1] : vector<16x16xf32> to vector<16xf32>
    %58 = vector.shape_cast %57 : vector<16xf32> to vector<16x1xf32>
    %59 = vector.broadcast %58 : vector<16x1xf32> to vector<16x16xf32>
    %60 = arith.subf %56, %59 : vector<16x16xf32>
    %61 = math.exp %60 : vector<16x16xf32>
    %cst_31 = arith.constant dense<0.000000e+00> : vector<16xf32>
    %62 = vector.multi_reduction <add>, %61, %cst_31 [1] : vector<16x16xf32> to vector<16xf32>
    %63 = vector.shape_cast %62 : vector<16xf32> to vector<16x1xf32>
    %64 = tpu.reciprocal %63 {approx = true} : vector<16x1xf32> -> vector<16x1xf32>
    %65 = vector.broadcast %64 : vector<16x1xf32> to vector<16x16xf32>
    %66 = arith.mulf %61, %65 : vector<16x16xf32>
    %67 = arith.truncf %66 : vector<16x16xf32> to vector<16x16xbf16>
    %68 = arith.truncf %46 : vector<16x128xf32> to vector<16x128xbf16>
    %cst_32 = arith.constant dense<0.000000e+00> : vector<16x128xf32>
    %69 = tpu.matmul %67, %68, %cst_32 {dimension_numbers = #tpu.dot_dimension_numbers<[1], [0], [0], [1], [0, 0, 1, 1], [], []>} : vector<16x16xbf16>, vector<16x128xbf16>, vector<16x128xf32> -> vector<16x128xf32>
    %70 = vector.broadcast %13 : vector<1x128xf32> to vector<16x128xf32>
    %71 = arith.addf %69, %70 : vector<16x128xf32>
    %72 = arith.addf %8, %71 : vector<16x128xf32>
    %c0_33 = arith.constant 0 : index
    %c0_34 = arith.constant 0 : index
    %73 = vector.load %arg10[%c0_33, %c0_34] : memref<1x128xf32, #tpu.memory_space<vmem>>, vector<1x128xf32>
    %c0_35 = arith.constant 0 : index
    %c0_36 = arith.constant 0 : index
    %74 = vector.load %arg11[%c0_35, %c0_36] : memref<1x128xf32, #tpu.memory_space<vmem>>, vector<1x128xf32>
    %c0_37 = arith.constant 0 : index
    %c0_38 = arith.constant 0 : index
    %75 = vector.load %arg12[%c0_37, %c0_38] : memref<128x128xbf16, #tpu.memory_space<vmem>>, vector<128x128xbf16>
    %c0_39 = arith.constant 0 : index
    %c0_40 = arith.constant 0 : index
    %76 = vector.load %arg13[%c0_39, %c0_40] : memref<1x128xf32, #tpu.memory_space<vmem>>, vector<1x128xf32>
    %c0_41 = arith.constant 0 : index
    %c0_42 = arith.constant 0 : index
    %77 = vector.load %arg14[%c0_41, %c0_42] : memref<1x128xf32, #tpu.memory_space<vmem>>, vector<1x128xf32>
    %cst_43 = arith.constant dense<0.000000e+00> : vector<128xf32>
    %78 = vector.multi_reduction <add>, %72, %cst_43 [0] : vector<16x128xf32> to vector<128xf32>
    %79 = vector.shape_cast %78 : vector<128xf32> to vector<1x128xf32>
    %cst_44 = arith.constant 1.600000e+01 : f32
    %80 = vector.broadcast %cst_44 : f32 to vector<1x128xf32>
    %81 = arith.divf %79, %80 : vector<1x128xf32>
    %82 = vector.broadcast %81 : vector<1x128xf32> to vector<16x128xf32>
    %83 = arith.subf %72, %82 : vector<16x128xf32>
    %84 = arith.mulf %83, %83 : vector<16x128xf32>
    %cst_45 = arith.constant dense<0.000000e+00> : vector<128xf32>
    %85 = vector.multi_reduction <add>, %84, %cst_45 [0] : vector<16x128xf32> to vector<128xf32>
    %86 = vector.shape_cast %85 : vector<128xf32> to vector<1x128xf32>
    %cst_46 = arith.constant 1.600000e+01 : f32
    %87 = vector.broadcast %cst_46 : f32 to vector<1x128xf32>
    %88 = arith.divf %86, %87 : vector<1x128xf32>
    %89 = vector.broadcast %81 : vector<1x128xf32> to vector<16x128xf32>
    %90 = arith.subf %72, %89 : vector<16x128xf32>
    %cst_47 = arith.constant 9.99999974E-6 : f32
    %91 = vector.broadcast %cst_47 : f32 to vector<1x128xf32>
    %92 = arith.addf %88, %91 : vector<1x128xf32>
    %93 = math.rsqrt %92 : vector<1x128xf32>
    %94 = vector.broadcast %93 : vector<1x128xf32> to vector<16x128xf32>
    %95 = arith.mulf %90, %94 : vector<16x128xf32>
    %96 = vector.broadcast %73 : vector<1x128xf32> to vector<16x128xf32>
    %97 = arith.mulf %95, %96 : vector<16x128xf32>
    %98 = vector.broadcast %74 : vector<1x128xf32> to vector<16x128xf32>
    %99 = arith.addf %97, %98 : vector<16x128xf32>
    %cst_48 = arith.constant 0.000000e+00 : f32
    %100 = vector.broadcast %cst_48 : f32 to vector<16x128xf32>
    %101 = arith.cmpf oge, %99, %100 : vector<16x128xf32>
    %cst_49 = arith.constant 0.00999999977 : f32
    %102 = vector.broadcast %cst_49 : f32 to vector<16x128xf32>
    %103 = arith.mulf %102, %99 : vector<16x128xf32>
    %104 = arith.select %101, %99, %103 : vector<16x128xi1>, vector<16x128xf32>
    %105 = arith.truncf %104 : vector<16x128xf32> to vector<16x128xbf16>
    %cst_50 = arith.constant dense<0.000000e+00> : vector<16x128xf32>
    %106 = tpu.matmul %105, %75, %cst_50 {dimension_numbers = #tpu.dot_dimension_numbers<[1], [0], [0], [1], [0, 0, 1, 1], [], []>} : vector<16x128xbf16>, vector<128x128xbf16>, vector<16x128xf32> -> vector<16x128xf32>
    %107 = vector.extract_strided_slice %106 {offsets = [0, 32], sizes = [16, 1], strides = [1, 1]} : vector<16x128xf32> to vector<16x1xf32>
    %cst_51 = arith.constant dense<0.000000e+00> : vector<1x16xf32>
    %108 = tpu.matmul %76, %106, %cst_51 {dimension_numbers = #tpu.dot_dimension_numbers<[1], [1], [0], [0], [0, 0, 1, 0], [], []>} : vector<1x128xf32>, vector<16x128xf32>, vector<1x16xf32> -> vector<1x16xf32>
    %109 = vector.broadcast %1 : vector<1x128xf32> to vector<16x128xf32>
    %110 = arith.mulf %106, %109 : vector<16x128xf32>
    %111 = vector.broadcast %107 : vector<16x1xf32> to vector<16x16xf32>
    %112 = vector.broadcast %108 : vector<1x16xf32> to vector<16x16xf32>
    %113 = arith.addf %111, %112 : vector<16x16xf32>
    %cst_52 = arith.constant 0.000000e+00 : f32
    %114 = vector.broadcast %cst_52 : f32 to vector<16x16xf32>
    %115 = arith.cmpf oge, %113, %114 : vector<16x16xf32>
    %cst_53 = arith.constant 2.000000e-01 : f32
    %116 = vector.broadcast %cst_53 : f32 to vector<16x16xf32>
    %117 = arith.mulf %116, %113 : vector<16x16xf32>
    %118 = arith.select %115, %113, %117 : vector<16x16xi1>, vector<16x16xf32>
    %119 = arith.extf %0 : vector<16x16xbf16> to vector<16x16xf32>
    %120 = arith.addf %118, %119 : vector<16x16xf32>
    %cst_54 = arith.constant dense<0xFF800000> : vector<16xf32>
    %121 = vector.multi_reduction <maximumf>, %120, %cst_54 [1] : vector<16x16xf32> to vector<16xf32>
    %122 = vector.shape_cast %121 : vector<16xf32> to vector<16x1xf32>
    %123 = vector.broadcast %122 : vector<16x1xf32> to vector<16x16xf32>
    %124 = arith.subf %120, %123 : vector<16x16xf32>
    %125 = math.exp %124 : vector<16x16xf32>
    %cst_55 = arith.constant dense<0.000000e+00> : vector<16xf32>
    %126 = vector.multi_reduction <add>, %125, %cst_55 [1] : vector<16x16xf32> to vector<16xf32>
    %127 = vector.shape_cast %126 : vector<16xf32> to vector<16x1xf32>
    %128 = tpu.reciprocal %127 {approx = true} : vector<16x1xf32> -> vector<16x1xf32>
    %129 = vector.broadcast %128 : vector<16x1xf32> to vector<16x16xf32>
    %130 = arith.mulf %125, %129 : vector<16x16xf32>
    %131 = arith.truncf %130 : vector<16x16xf32> to vector<16x16xbf16>
    %132 = arith.truncf %110 : vector<16x128xf32> to vector<16x128xbf16>
    %cst_56 = arith.constant dense<0.000000e+00> : vector<16x128xf32>
    %133 = tpu.matmul %131, %132, %cst_56 {dimension_numbers = #tpu.dot_dimension_numbers<[1], [0], [0], [1], [0, 0, 1, 1], [], []>} : vector<16x16xbf16>, vector<16x128xbf16>, vector<16x128xf32> -> vector<16x128xf32>
    %134 = vector.broadcast %77 : vector<1x128xf32> to vector<16x128xf32>
    %135 = arith.addf %133, %134 : vector<16x128xf32>
    %136 = arith.addf %72, %135 : vector<16x128xf32>
    %137 = arith.truncf %136 : vector<16x128xf32> to vector<16x128xbf16>
    %c0_57 = arith.constant 0 : index
    %c0_58 = arith.constant 0 : index
    %138 = vector.load %arg15[%c0_57, %c0_58] : memref<16x128xbf16, #tpu.memory_space<vmem>>, vector<16x128xbf16>
    tpu.vector_store %arg15[%c0_57, %c0_58], %137 {strides = array<i32>} : memref<16x128xbf16, #tpu.memory_space<vmem>>, vector<16x128xbf16>,
    return
  }
}

</mosaic_0001>

<llo_original>
// kernel: tpu_custom_call.1
$region0: #{tpu_custom_call.1}
  #allocation0 [shape = 'u32[]', space=smem, size = 0x4, offset = 0x4, fixed_abs, tag = 'smem constant byte address 0x4 - core index']
  #allocation1 [shape = 'u32[144,128]{1,0:T(1,128)}', space=vmem, size = 0x12000, scoped, tag = 'internal scratch']
  %s0 = inlined_call_operand.hbm [shape: f32[16,128], index: 0, kind: input, shape index: {}]
  %s1 = inlined_call_operand.hbm [shape: bf16[16,16], index: 1, kind: input, shape index: {}]
  %s2 = inlined_call_operand.hbm [shape: bf16[128,128], index: 2, kind: input, shape index: {}]
  %s3 = inlined_call_operand.vmem [shape: f32[1,128], index: 3, kind: input, shape index: {}]
  %s4 = inlined_call_operand.vmem [shape: f32[1,128], index: 4, kind: input, shape index: {}]
  %s5 = inlined_call_operand.vmem [shape: f32[1,128], index: 5, kind: input, shape index: {}]
  %s6 = inlined_call_operand.vmem [shape: f32[1,128], index: 6, kind: input, shape index: {}]
  %s7 = inlined_call_operand.hbm [shape: bf16[128,128], index: 7, kind: input, shape index: {}]
  %s8 = inlined_call_operand.vmem [shape: f32[1,128], index: 8, kind: input, shape index: {}]
  %s9 = inlined_call_operand.vmem [shape: f32[1,128], index: 9, kind: input, shape index: {}]
  %s10 = inlined_call_operand.vmem [shape: f32[1,128], index: 10, kind: input, shape index: {}]
  %s11 = inlined_call_operand.vmem [shape: f32[1,128], index: 11, kind: input, shape index: {}]
  %s12 = inlined_call_operand.hbm [shape: bf16[128,128], index: 12, kind: input, shape index: {}]
  %s13 = inlined_call_operand.vmem [shape: f32[1,128], index: 13, kind: input, shape index: {}]
  %s14 = inlined_call_operand.vmem [shape: f32[1,128], index: 14, kind: input, shape index: {}]
  %s15 = inlined_call_operand.hbm [shape: bf16[16,128], index: 15, kind: output, shape index: {}]
  %s16 = sld [smem:[#allocation0]]
  $region90: #{tpu_custom_call.1} parent=0
    _
  %s18 = ssub.s32 1, %s16
  %s19 = scalar_select 0, %s18, %s16
  $region1: #{tpu_custom_call.1} parent=0
    #allocation2 [shape = 'u8[8192]{0}', space=vmem, size = 0x2000, scoped, tag = 'input window, operand 0, single buffered']
    #allocation3 [shape = 's32[1]{0}', space=sflag, size = 0x4, scoped, tag = 'scoped memory for tpu_custom_call.1']
    #allocation4 [shape = 's32[1]{0}', space=sflag, size = 0x4, scoped, tag = 'scoped memory for tpu_custom_call.1']
    #allocation5 [shape = 'u8[4096]{0}', space=vmem, size = 0x1000, scoped, tag = 'input window, operand 1, single buffered']
    #allocation6 [shape = 's32[1]{0}', space=sflag, size = 0x4, scoped, tag = 'scoped memory for tpu_custom_call.1']
    #allocation7 [shape = 'u8[32768]{0}', space=vmem, size = 0x8000, scoped, tag = 'input window, operand 2, single buffered']
    #allocation8 [shape = 'u8[32768]{0}', space=vmem, size = 0x8000, scoped, tag = 'input window, operand 7, single buffered']
    #allocation9 [shape = 's32[1]{0}', space=sflag, size = 0x4, scoped, tag = 'scoped memory for tpu_custom_call.1']
    #allocation10 [shape = 'u8[32768]{0}', space=vmem, size = 0x8000, scoped, tag = 'input window, operand 12, single buffered']
    #allocation11 [shape = 'u8[4096]{0}', space=vmem, size = 0x1000, scoped, tag = 'output window, operand 0, single buffered']
    %20 = vsyncpa [#allocation3], 0
    %21 = vsyncpa [#allocation6], 0
    %22 = vsyncpa [#allocation9], 0
    %23 = vsyncpa [#allocation4], 0
    // Predicated region
    $region2: #{tpu_custom_call.1} parent=1 // pred_check
      _
    $region3: #{tpu_custom_call.1} parent=1 // pred_check_branch
      %25 = sbr.rel (0) target = $region5
    $region4: #{tpu_custom_call.1} parent=1 // pred_region
      %s27 = ssub.s32 256, 256
      %28 = vsyncadd [#allocation3], %s27
      %s29 = sshll.u32 [#allocation2], 4
      %s30 = int_to_ptr.vmem [resolvable:$true] %s29
      %35 = dma.hbm_to_vmem [thread:$0]  %s0, 256, %s30, [#allocation3], 128, 128, 8
    $region5: #{tpu_custom_call.1} parent=1 // pred_fallthru
      _
    // Predicated region
    $region6: #{tpu_custom_call.1} parent=1 // pred_check
      _
    $region7: #{tpu_custom_call.1} parent=1 // pred_check_branch
      %37 = sbr.rel (0) target = $region9
    $region8: #{tpu_custom_call.1} parent=1 // pred_region
      %s39 = ssub.s32 128, 128
      %40 = vsyncadd [#allocation6], %s39
      %s41 = sshll.u32 [#allocation5], 4
      %s42 = int_to_ptr.vmem [resolvable:$true] %s41
      %47 = dma.hbm_to_vmem [thread:$0]  %s1, 128, %s42, [#allocation6], 64, 64, 4
    $region9: #{tpu_custom_call.1} parent=1 // pred_fallthru
      _
    // Predicated region
    $region10: #{tpu_custom_call.1} parent=1 // pred_check
      _
    $region11: #{tpu_custom_call.1} parent=1 // pred_check_branch
      %49 = sbr.rel (0) target = $region13
    $region12: #{tpu_custom_call.1} parent=1 // pred_region
      %s51 = ssub.s32 1024, 1024
      %52 = vsyncadd [#allocation6], %s51
      %s53 = sshll.u32 [#allocation7], 4
      %s54 = int_to_ptr.vmem [resolvable:$true] %s53
      %59 = dma.hbm_to_vmem [thread:$0]  %s2, 1024, %s54, [#allocation6], 64, 64, 4
    $region13: #{tpu_custom_call.1} parent=1 // pred_fallthru
      _
    // Predicated region
    $region14: #{tpu_custom_call.1} parent=1 // pred_check
      _
    $region15: #{tpu_custom_call.1} parent=1 // pred_check_branch
      %61 = sbr.rel (0) target = $region17
    $region16: #{tpu_custom_call.1} parent=1 // pred_region
      _
    $region17: #{tpu_custom_call.1} parent=1 // pred_fallthru
      _
    // Predicated region
    $region18: #{tpu_custom_call.1} parent=1 // pred_check
      _
    $region19: #{tpu_custom_call.1} parent=1 // pred_check_branch
      %63 = sbr.rel (0) target = $region21
    $region20: #{tpu_custom_call.1} parent=1 // pred_region
      _
    $region21: #{tpu_custom_call.1} parent=1 // pred_fallthru
      _
    // Predicated region
    $region22: #{tpu_custom_call.1} parent=1 // pred_check
      _
    $region23: #{tpu_custom_call.1} parent=1 // pred_check_branch
      %65 = sbr.rel (0) target = $region25
    $region24: #{tpu_custom_call.1} parent=1 // pred_region
      _
    $region25: #{tpu_custom_call.1} parent=1 // pred_fallthru
      _
    // Predicated region
    $region26: #{tpu_custom_call.1} parent=1 // pred_check
      _
    $region27: #{tpu_custom_call.1} parent=1 // pred_check_branch
      %67 = sbr.rel (0) target = $region29
    $region28: #{tpu_custom_call.1} parent=1 // pred_region
      _
    $region29: #{tpu_custom_call.1} parent=1 // pred_fallthru
      _
    // Predicated region
    $region30: #{tpu_custom_call.1} parent=1 // pred_check
      _
    $region31: #{tpu_custom_call.1} parent=1 // pred_check_branch
      %69 = sbr.rel (0) target = $region33
    $region32: #{tpu_custom_call.1} parent=1 // pred_region
      %s71 = ssub.s32 1024, 1024
      %72 = vsyncadd [#allocation9], %s71
      %s73 = sshll.u32 [#allocation8], 4
      %s74 = int_to_ptr.vmem [resolvable:$true] %s73
      %79 = dma.hbm_to_vmem [thread:$0]  %s7, 1024, %s74, [#allocation9], 64, 64, 4
    $region33: #{tpu_custom_call.1} parent=1 // pred_fallthru
      _
    // Predicated region
    $region34: #{tpu_custom_call.1} parent=1 // pred_check
      _
    $region35: #{tpu_custom_call.1} parent=1 // pred_check_branch
      %81 = sbr.rel (0) target = $region37
    $region36: #{tpu_custom_call.1} parent=1 // pred_region
      _
    $region37: #{tpu_custom_call.1} parent=1 // pred_fallthru
      _
    // Predicated region
    $region38: #{tpu_custom_call.1} parent=1 // pred_check
      _
    $region39: #{tpu_custom_call.1} parent=1 // pred_check_branch
      %83 = sbr.rel (0) target = $region41
    $region40: #{tpu_custom_call.1} parent=1 // pred_region
      _
    $region41: #{tpu_custom_call.1} parent=1 // pred_fallthru
      _
    // Predicated region
    $region42: #{tpu_custom_call.1} parent=1 // pred_check
      _
    $region43: #{tpu_custom_call.1} parent=1 // pred_check_branch
      %85 = sbr.rel (0) target = $region45
    $region44: #{tpu_custom_call.1} parent=1 // pred_region
      _
    $region45: #{tpu_custom_call.1} parent=1 // pred_fallthru
      _
    // Predicated region
    $region46: #{tpu_custom_call.1} parent=1 // pred_check
      _
    $region47: #{tpu_custom_call.1} parent=1 // pred_check_branch
      %87 = sbr.rel (0) target = $region49
    $region48: #{tpu_custom_call.1} parent=1 // pred_region
      _
    $region49: #{tpu_custom_call.1} parent=1 // pred_fallthru
      _
    // Predicated region
    $region50: #{tpu_custom_call.1} parent=1 // pred_check
      _
    $region51: #{tpu_custom_call.1} parent=1 // pred_check_branch
      %89 = sbr.rel (0) target = $region53
    $region52: #{tpu_custom_call.1} parent=1 // pred_region
      %s91 = ssub.s32 1024, 1024
      %92 = vsyncadd [#allocation9], %s91
      %s93 = sshll.u32 [#allocation10], 4
      %s94 = int_to_ptr.vmem [resolvable:$true] %s93
      %99 = dma.hbm_to_vmem [thread:$0]  %s12, 1024, %s94, [#allocation9], 64, 64, 4
    $region53: #{tpu_custom_call.1} parent=1 // pred_fallthru
      _
    // Predicated region
    $region54: #{tpu_custom_call.1} parent=1 // pred_check
      _
    $region55: #{tpu_custom_call.1} parent=1 // pred_check_branch
      %101 = sbr.rel (0) target = $region57
    $region56: #{tpu_custom_call.1} parent=1 // pred_region
      _
    $region57: #{tpu_custom_call.1} parent=1 // pred_fallthru
      _
    // Predicated region
    $region58: #{tpu_custom_call.1} parent=1 // pred_check
      _
    $region59: #{tpu_custom_call.1} parent=1 // pred_check_branch
      %103 = sbr.rel (0) target = $region61
    $region60: #{tpu_custom_call.1} parent=1 // pred_region
      _
    $region61: #{tpu_custom_call.1} parent=1 // pred_fallthru
      _
    // Predicated region
    $region62: #{tpu_custom_call.1} parent=1 // pred_check
      _
    $region63: #{tpu_custom_call.1} parent=1 // pred_check_branch
      %105 = sbr.rel (0) target = $region65
    $region64: #{tpu_custom_call.1} parent=1 // pred_region
      %106 = dma.done [#allocation3], 256
    $region65: #{tpu_custom_call.1} parent=1 // pred_fallthru
      _
    // Predicated region
    $region66: #{tpu_custom_call.1} parent=1 // pred_check
      _
    $region67: #{tpu_custom_call.1} parent=1 // pred_check_branch
      %108 = sbr.rel (0) target = $region69
    $region68: #{tpu_custom_call.1} parent=1 // pred_region
      %109 = dma.done [#allocation6], 128
    $region69: #{tpu_custom_call.1} parent=1 // pred_fallthru
      _
    // Predicated region
    $region70: #{tpu_custom_call.1} parent=1 // pred_check
      _
    $region71: #{tpu_custom_call.1} parent=1 // pred_check_branch
      %111 = sbr.rel (0) target = $region73
    $region72: #{tpu_custom_call.1} parent=1 // pred_region
      %112 = dma.done [#allocation6], 1024
    $region73: #{tpu_custom_call.1} parent=1 // pred_fallthru
      _
    // Predicated region
    $region74: #{tpu_custom_call.1} parent=1 // pred_check
      _
    $region75: #{tpu_custom_call.1} parent=1 // pred_check_branch
      %114 = sbr.rel (0) target = $region77
    $region76: #{tpu_custom_call.1} parent=1 // pred_region
      %115 = dma.done [#allocation9], 1024
    $region77: #{tpu_custom_call.1} parent=1 // pred_fallthru
      _
    // Predicated region
    $region78: #{tpu_custom_call.1} parent=1 // pred_check
      _
    $region79: #{tpu_custom_call.1} parent=1 // pred_check_branch
      %117 = sbr.rel (0) target = $region81
    $region80: #{tpu_custom_call.1} parent=1 // pred_region
      %118 = dma.done [#allocation9], 1024
    $region81: #{tpu_custom_call.1} parent=1 // pred_fallthru
      _
    %v120 = vld [vmem:[#allocation5] sm:$0xf]
    %v121 = vld [vmem:[#allocation5 + $0x4] sm:$0xf]
    %v122 = vld [vmem:[%s4] sm:$0x1]
    %v123 = vld [vmem:[#allocation2] sm:$0xff]
    %v124 = vld [vmem:[#allocation2 + $0x8] sm:$0xff]
    %v125 = vpack.c.bf16 %v124, %v123
    %v126 = vld [vmem:[#allocation7] sm:$0xf]
    %v127 = vld [vmem:[#allocation7 + $0x4] sm:$0xf]
    %v128 = vld [vmem:[#allocation7 + $0x8] sm:$0xf]
    %v129 = vld [vmem:[#allocation7 + $0xc] sm:$0xf]
    %v130 = vld [vmem:[#allocation7 + $0x10] sm:$0xf]
    %v131 = vld [vmem:[#allocation7 + $0x14] sm:$0xf]
    %v132 = vld [vmem:[#allocation7 + $0x18] sm:$0xf]
    %v133 = vld [vmem:[#allocation7 + $0x1c] sm:$0xf]
    %v134 = vld [vmem:[#allocation7 + $0x20] sm:$0xf]
    %v135 = vld [vmem:[#allocation7 + $0x24] sm:$0xf]
    %v136 = vld [vmem:[#allocation7 + $0x28] sm:$0xf]
    %v137 = vld [vmem:[#allocation7 + $0x2c] sm:$0xf]
    %v138 = vld [vmem:[#allocation7 + $0x30] sm:$0xf]
    %v139 = vld [vmem:[#allocation7 + $0x34] sm:$0xf]
    %v140 = vld [vmem:[#allocation7 + $0x38] sm:$0xf]
    %v141 = vld [vmem:[#allocation7 + $0x3c] sm:$0xf]
    %v142 = vld [vmem:[%s3] sm:$0x1]
    %v144 = vlaneseq
    %v145 = vshrl.u32 %v144, 7
    %v146 = vsub.s32 0, %v145
    %v147 = vrot.slane %v142, %v146
    %v165 = vunpack.c.l.b16 %v126
    %v166 = vunpack.c.l.b16 %v127
    %v167 = vunpack.c.l.b16 %v128
    %v168 = vunpack.c.l.b16 %v129
    %v169 = vunpack.c.l.b16 %v130
    %v170 = vunpack.c.l.b16 %v131
    %v171 = vunpack.c.l.b16 %v132
    %v172 = vunpack.c.l.b16 %v133
    %v173 = vunpack.c.l.b16 %v134
    %v174 = vunpack.c.l.b16 %v135
    %v175 = vunpack.c.l.b16 %v136
    %v176 = vunpack.c.l.b16 %v137
    %v177 = vunpack.c.l.b16 %v138
    %v178 = vunpack.c.l.b16 %v139
    %v179 = vunpack.c.l.b16 %v140
    %v180 = vunpack.c.l.b16 %v141
    %v181 = vpack.c.b16 %v166, %v165
    %v182 = vpack.c.b16 %v168, %v167
    %v183 = vpack.c.b16 %v170, %v169
    %v184 = vpack.c.b16 %v172, %v171
    %v185 = vpack.c.b16 %v174, %v173
    %v186 = vpack.c.b16 %v176, %v175
    %v187 = vpack.c.b16 %v178, %v177
    %v188 = vpack.c.b16 %v180, %v179
    %197 = vmatprep.subr.bf16.mxu0 0
    %198 = vmatpush1.bf16.msra.mxu0 %v181
    %199 = vmatprep.subr.bf16.mxu0 0
    %200 = vmatpush1.bf16.msra.mxu0 %v182
    %201 = vmatprep.subr.bf16.mxu0 0
    %202 = vmatpush1.bf16.msra.mxu0 %v183
    %203 = vmatprep.subr.bf16.mxu0 0
    %204 = vmatpush1.bf16.msra.mxu0 %v184
    %205 = vmatprep.subr.bf16.mxu0 0
    %206 = vmatpush1.bf16.msra.mxu0 %v185
    %207 = vmatprep.subr.bf16.mxu0 0
    %208 = vmatpush1.bf16.msra.mxu0 %v186
    %209 = vmatprep.subr.bf16.mxu0 0
    %210 = vmatpush1.bf16.msra.mxu0 %v187
    %211 = vmatprep.subr.bf16.mxu0 0
    %212 = vmatpush1.bf16.msra.mxu0 %v188
    %213 = vmatprep.subr.bf16.mxu0 0
    %214 = vmatpush1.bf16.msra.mxu0 0
    %215 = vmatprep.subr.bf16.mxu0 0
    %216 = vmatpush1.bf16.msra.mxu0 0
    %217 = vmatprep.subr.bf16.mxu0 0
    %218 = vmatpush1.bf16.msra.mxu0 0
    %219 = vmatprep.subr.bf16.mxu0 0
    %220 = vmatpush1.bf16.msra.mxu0 0
    %221 = vmatprep.subr.bf16.mxu0 0
    %222 = vmatpush1.bf16.msra.mxu0 0
    %223 = vmatprep.subr.bf16.mxu0 0
    %224 = vmatpush1.bf16.msra.mxu0 0
    %225 = vmatprep.subr.bf16.mxu0 0
    %226 = vmatpush1.bf16.msra.mxu0 0
    %227 = vmatprep.subr.bf16.mxu0 0
    %228 = vmatpush1.bf16.msra.mxu0 0
    %229 = vmatprep.mubr.bf16.mxu0 0
    %230 = vmatmul.mubr.bf16.gmra.mrb[0].mxu0 %v125
    %v231 = vpop.f32.mrb[0].mxu0
    %v232 = vadd.f32 %v147, %v231
    %v233 = vpop.f32.mrb[0].mxu0
    %v234 = vpop.f32.mrb[0].mxu0
    %v235 = vadd.f32 %v147, %v234
    %v236 = vpop.f32.mrb[0].mxu0
    %237 = vdwg.mxu0
    %v238 = vld [vmem:[%s5] sm:$0x1]
    %v239 = vld [vmem:[%s6] sm:$0x1]
    %v240 = vld [vmem:[#allocation8] sm:$0xf]
    %v241 = vld [vmem:[#allocation8 + $0x4] sm:$0xf]
    %v242 = vld [vmem:[#allocation8 + $0x8] sm:$0xf]
    %v243 = vld [vmem:[#allocation8 + $0xc] sm:$0xf]
    %v244 = vld [vmem:[#allocation8 + $0x10] sm:$0xf]
    %v245 = vld [vmem:[#allocation8 + $0x14] sm:$0xf]
    %v246 = vld [vmem:[#allocation8 + $0x18] sm:$0xf]
    %v247 = vld [vmem:[#allocation8 + $0x1c] sm:$0xf]
    %v248 = vld [vmem:[#allocation8 + $0x20] sm:$0xf]
    %v249 = vld [vmem:[#allocation8 + $0x24] sm:$0xf]
    %v250 = vld [vmem:[#allocation8 + $0x28] sm:$0xf]
    %v251 = vld [vmem:[#allocation8 + $0x2c] sm:$0xf]
    %v252 = vld [vmem:[#allocation8 + $0x30] sm:$0xf]
    %v253 = vld [vmem:[#allocation8 + $0x34] sm:$0xf]
    %v254 = vld [vmem:[#allocation8 + $0x38] sm:$0xf]
    %v255 = vld [vmem:[#allocation8 + $0x3c] sm:$0xf]
    %v256 = vld [vmem:[%s8] sm:$0x1]
    %v257 = vld [vmem:[%s9] sm:$0x1]
    %v258 = vadd.f32 %v232, %v235
    %v259 = vrot.slane %v258, 4
    %v260 = vadd.f32 %v258, %v259
    %v261 = vrot.slane %v260, 2
    %v262 = vadd.f32 %v260, %v261
    %v263 = vrot.slane %v262, 1
    %v264 = vadd.f32 %v262, %v263
    %v265 = vrcp.pop 16.0
    %v266 = vmul.f32 %v264, %v265
    %v267 = vsub.f32 %v232, %v266
    %v268 = vsub.f32 %v235, %v266
    %v269 = vmul.f32 %v267, %v267
    %v270 = vmul.f32 %v268, %v268
    %v271 = vadd.f32 %v269, %v270
    %v272 = vrot.slane %v271, 4
    %v273 = vadd.f32 %v271, %v272
    %v274 = vrot.slane %v273, 2
    %v275 = vadd.f32 %v273, %v274
    %v276 = vrot.slane %v275, 1
    %v277 = vadd.f32 %v275, %v276
    %v278 = vmul.f32 %v277, %v265
    %v279 = vadd.f32 %v278, 1e-05
    %v280 = vrsqrt.pop %v279
    %v281 = vmul.f32 %v267, %v280
    %v282 = vmul.f32 %v268, %v280
    %v284 = vlaneseq
    %v285 = vshrl.u32 %v284, 7
    %v286 = vsub.s32 0, %v285
    %v287 = vrot.slane %v238, %v286
    %v289 = vmul.f32 %v281, %v287
    %v290 = vmul.f32 %v282, %v287
    %v292 = vlaneseq
    %v293 = vshrl.u32 %v292, 7
    %v294 = vsub.s32 0, %v293
    %v295 = vrot.slane %v239, %v294
    %v297 = vadd.f32 %v289, %v295
    %v298 = vadd.f32 %v290, %v295
    %vm299 = vcmp.ge.f32.partialorder %v297, 0.0
    %vm300 = vcmp.ge.f32.partialorder %v298, 0.0
    %v301 = vmul.f32 %v297, 0.01
    %v302 = vmul.f32 %v298, 0.01
    %v303 = vsel %vm299, %v297, %v301
    %v304 = vsel %vm300, %v298, %v302
    %v305 = vpack.c.bf16 %v304, %v303
    %v322 = vunpack.c.l.b16 %v240
    %v323 = vunpack.c.l.b16 %v241
    %v324 = vunpack.c.l.b16 %v242
    %v325 = vunpack.c.l.b16 %v243
    %v326 = vunpack.c.l.b16 %v244
    %v327 = vunpack.c.l.b16 %v245
    %v328 = vunpack.c.l.b16 %v246
    %v329 = vunpack.c.l.b16 %v247
    %v330 = vunpack.c.l.b16 %v248
    %v331 = vunpack.c.l.b16 %v249
    %v332 = vunpack.c.l.b16 %v250
    %v333 = vunpack.c.l.b16 %v251
    %v334 = vunpack.c.l.b16 %v252
    %v335 = vunpack.c.l.b16 %v253
    %v336 = vunpack.c.l.b16 %v254
    %v337 = vunpack.c.l.b16 %v255
    %v338 = vpack.c.b16 %v323, %v322
    %v339 = vpack.c.b16 %v325, %v324
    %v340 = vpack.c.b16 %v327, %v326
    %v341 = vpack.c.b16 %v329, %v328
    %v342 = vpack.c.b16 %v331, %v330
    %v343 = vpack.c.b16 %v333, %v332
    %v344 = vpack.c.b16 %v335, %v334
    %v345 = vpack.c.b16 %v337, %v336
    %354 = vmatprep.subr.bf16.mxu0 0
    %355 = vmatpush1.bf16.msra.mxu0 %v338
    %356 = vmatprep.subr.bf16.mxu0 0
    %357 = vmatpush1.bf16.msra.mxu0 %v339
    %358 = vmatprep.subr.bf16.mxu0 0
    %359 = vmatpush1.bf16.msra.mxu0 %v340
    %360 = vmatprep.subr.bf16.mxu0 0
    %361 = vmatpush1.bf16.msra.mxu0 %v341
    %362 = vmatprep.subr.bf16.mxu0 0
    %363 = vmatpush1.bf16.msra.mxu0 %v342
    %364 = vmatprep.subr.bf16.mxu0 0
    %365 = vmatpush1.bf16.msra.mxu0 %v343
    %366 = vmatprep.subr.bf16.mxu0 0
    %367 = vmatpush1.bf16.msra.mxu0 %v344
    %368 = vmatprep.subr.bf16.mxu0 0
    %369 = vmatpush1.bf16.msra.mxu0 %v345
    %370 = vmatprep.subr.bf16.mxu0 0
    %371 = vmatpush1.bf16.msra.mxu0 0
    %372 = vmatprep.subr.bf16.mxu0 0
    %373 = vmatpush1.bf16.msra.mxu0 0
    %374 = vmatprep.subr.bf16.mxu0 0
    %375 = vmatpush1.bf16.msra.mxu0 0
    %376 = vmatprep.subr.bf16.mxu0 0
    %377 = vmatpush1.bf16.msra.mxu0 0
    %378 = vmatprep.subr.bf16.mxu0 0
    %379 = vmatpush1.bf16.msra.mxu0 0
    %380 = vmatprep.subr.bf16.mxu0 0
    %381 = vmatpush1.bf16.msra.mxu0 0
    %382 = vmatprep.subr.bf16.mxu0 0
    %383 = vmatpush1.bf16.msra.mxu0 0
    %384 = vmatprep.subr.bf16.mxu0 0
    %385 = vmatpush1.bf16.msra.mxu0 0
    %386 = vmatprep.mubr.bf16.mxu0 0
    %387 = vmatmul.mubr.bf16.gmra.mrb[0].mxu0 %v305
    %v388 = vpop.f32.mrb[0].mxu0
    %v389 = vadd.f32 0.0, %v388
    %v390 = vpop.f32.mrb[0].mxu0
    %v391 = vpop.f32.mrb[0].mxu0
    %v392 = vadd.f32 0.0, %v391
    %v393 = vpop.f32.mrb[0].mxu0
    %394 = vdwg.mxu0
    %395 = vmatprep.subr.mxu0 0.0
    %396 = vmatpush1.xpose.msra.mxu0 %v389
    %397 = vmatprep.subr.mxu0 0.0
    %398 = vmatpush1.xpose.msra.mxu0 %v392
    %399 = vmatprep.subr.mxu0 0.0
    %400 = vmatpush1.xpose.msra.mxu0 0.0
    %401 = vmatprep.subr.mxu0 0.0
    %402 = vmatpush1.xpose.msra.mxu0 0.0
    %403 = vmatprep.subr.mxu0 0.0
    %404 = vmatpush1.xpose.msra.mxu0 0.0
    %405 = vmatprep.subr.mxu0 0.0
    %406 = vmatpush1.xpose.msra.mxu0 0.0
    %407 = vmatprep.subr.mxu0 0.0
    %408 = vmatpush1.xpose.msra.mxu0 0.0
    %409 = vmatprep.subr.mxu0 0.0
    %410 = vmatpush1.xpose.msra.mxu0 0.0
    %411 = vmatprep.subr.mxu0 0.0
    %412 = vmatpush1.xpose.msra.mxu0 0.0
    %413 = vmatprep.subr.mxu0 0.0
    %414 = vmatpush1.xpose.msra.mxu0 0.0
    %415 = vmatprep.subr.mxu0 0.0
    %416 = vmatpush1.xpose.msra.mxu0 0.0
    %417 = vmatprep.subr.mxu0 0.0
    %418 = vmatpush1.xpose.msra.mxu0 0.0
    %419 = vmatprep.subr.mxu0 0.0
    %420 = vmatpush1.xpose.msra.mxu0 0.0
    %421 = vmatprep.subr.mxu0 0.0
    %422 = vmatpush1.xpose.msra.mxu0 0.0
    %423 = vmatprep.subr.mxu0 0.0
    %424 = vmatpush1.xpose.msra.mxu0 0.0
    %425 = vmatprep.subr.mxu0 0.0
    %426 = vmatpush1.xpose.msra.mxu0 0.0
    %427 = vmatprep.subr.mxu0 0.0
    %428 = vmatpush1.xpose.msra.mxu0 0.0
    %429 = vmatprep.subr.mxu0 0.0
    %430 = vmatpush1.xpose.msra.mxu0 0.0
    %431 = vmatprep.subr.mxu0 0.0
    %432 = vmatpush1.xpose.msra.mxu0 0.0
    %433 = vmatprep.subr.mxu0 0.0
    %434 = vmatpush1.xpose.msra.mxu0 0.0
    %435 = vmatprep.subr.mxu0 0.0
    %436 = vmatpush1.xpose.msra.mxu0 0.0
    %437 = vmatprep.subr.mxu0 0.0
    %438 = vmatpush1.xpose.msra.mxu0 0.0
    %439 = vmatprep.subr.mxu0 0.0
    %440 = vmatpush1.xpose.msra.mxu0 0.0
    %441 = vmatprep.subr.mxu0 0.0
    %442 = vmatpush1.xpose.msra.mxu0 0.0
    %443 = vmatprep.subr.mxu0 0.0
    %444 = vmatpush1.xpose.msra.mxu0 0.0
    %445 = vmatprep.subr.mxu0 0.0
    %446 = vmatpush1.xpose.msra.mxu0 0.0
    %447 = vmatprep.subr.mxu0 0.0
    %448 = vmatpush1.xpose.msra.mxu0 0.0
    %449 = vmatprep.subr.mxu0 0.0
    %450 = vmatpush1.xpose.msra.mxu0 0.0
    %451 = vmatprep.subr.mxu0 0.0
    %452 = vmatpush1.xpose.msra.mxu0 0.0
    %453 = vmatprep.subr.mxu0 0.0
    %454 = vmatpush1.xpose.msra.mxu0 0.0
    %455 = vmatprep.subr.mxu0 0.0
    %456 = vmatpush1.xpose.msra.mxu0 0.0
    %457 = vmatprep.subr.mxu0 0.0
    %458 = vmatpush1.xpose.msra.mxu0 0.0
    %459 = vmatprep.mubr.f32.mxu0 0.0
    %460 = vmatmul.mubr.f32.gmra.mrb[0].mxu0 %v256
    %v461 = vpop.f32.mrb[0].mxu0
    %v462 = vadd.f32 0.0, %v461
    %v463 = vpop.f32.mrb[0].mxu0
    %464 = vdwg.mxu0
    %v466 = vlaneseq
    %v467 = vshrl.u32 %v466, 7
    %v468 = vsub.s32 0, %v467
    %v469 = vrot.slane %v122, %v468
    %v471 = vmul.f32 %v389, %v469
    %v472 = vmul.f32 %v392, %v469
    %474 = vset.pattern.permute.xlu0 32
    %475 = vperm.xlu0 %474, %v389
    %v476 = vpop.permute.xlu0 %475
    %479 = vset.pattern.permute.xlu0 32
    %480 = vperm.xlu0 %479, %v392
    %v481 = vpop.permute.xlu0 %480
    %v483 = vlaneseq
    %v484 = vshrl.u32 %v483, 7
    %v485 = vsub.s32 0, %v484
    %v486 = vrot.slane %v462, %v485
    %v487 = vadd.f32 %v476, %v486
    %v488 = vadd.f32 %v481, %v486
    %vm489 = vcmp.ge.f32.partialorder %v487, 0.0
    %vm490 = vcmp.ge.f32.partialorder %v488, 0.0
    %v491 = vmul.f32 %v487, 0.2
    %v492 = vmul.f32 %v488, 0.2
    %v493 = vsel %vm489, %v487, %v491
    %v494 = vsel %vm490, %v488, %v492
    %v495 = vunpack.c.l.bf16 %v120
    %v496 = vunpack.c.l.bf16 %v121
    %v497 = vadd.f32 %v493, %v495
    %v498 = vadd.f32 %v494, %v496
    %vm499 = vcmask 130048
    %v500 = vsel %vm499, %v497, -inf
    %501 = vmax.xlane.f32.xlu0 %v500
    %v502 = vpop.xlane.xlu0 %501
    %v503 = vsel %vm499, %v498, -inf
    %504 = vmax.xlane.f32.xlu0 %v503
    %v505 = vpop.xlane.xlu0 %504
    %v506 = vsub.f32 %v497, %v502
    %v507 = vsub.f32 %v498, %v505
    %v508 = vmul.f32 %v506, 1.442695
    %v509 = vpow.pop %v508
    %v510 = vmul.f32 %v507, 1.442695
    %v511 = vpow.pop %v510
    %v512 = vsel %vm499, %v509, 0.0
    %513 = vadd.xlane.f32.xlu0 %v512
    %v514 = vpop.xlane.xlu0 %513
    %v515 = vsel %vm499, %v511, 0.0
    %516 = vadd.xlane.f32.xlu0 %v515
    %v517 = vpop.xlane.xlu0 %516
    %v518 = vrcp.pop %v514
    %v519 = vrcp.pop %v517
    %v520 = vmul.f32 %v509, %v518
    %v521 = vmul.f32 %v511, %v519
    %v522 = vpack.c.bf16 %v521, %v520
    %v523 = vpack.c.bf16 %v472, %v471
    %v525 = vlaneseq
    %v526 = vshrl.u32 %v525, 7
    %v527 = vsub.s32 0, %v526
    %v528 = vrot.slane %v257, %v527
    %v531 = vsel %vm499, %v522, 0
    %533 = vmatprep.subr.bf16.mxu0 0
    %534 = vmatpush1.bf16.msra.mxu0 %v523
    %535 = vmatprep.subr.bf16.mxu0 0
    %536 = vmatpush1.bf16.msra.mxu0 0
    %537 = vmatprep.subr.bf16.mxu0 0
    %538 = vmatpush1.bf16.msra.mxu0 0
    %539 = vmatprep.subr.bf16.mxu0 0
    %540 = vmatpush1.bf16.msra.mxu0 0
    %541 = vmatprep.subr.bf16.mxu0 0
    %542 = vmatpush1.bf16.msra.mxu0 0
    %543 = vmatprep.subr.bf16.mxu0 0
    %544 = vmatpush1.bf16.msra.mxu0 0
    %545 = vmatprep.subr.bf16.mxu0 0
    %546 = vmatpush1.bf16.msra.mxu0 0
    %547 = vmatprep.subr.bf16.mxu0 0
    %548 = vmatpush1.bf16.msra.mxu0 0
    %549 = vmatprep.subr.bf16.mxu0 0
    %550 = vmatpush1.bf16.msra.mxu0 0
    %551 = vmatprep.subr.bf16.mxu0 0
    %552 = vmatpush1.bf16.msra.mxu0 0
    %553 = vmatprep.subr.bf16.mxu0 0
    %554 = vmatpush1.bf16.msra.mxu0 0
    %555 = vmatprep.subr.bf16.mxu0 0
    %556 = vmatpush1.bf16.msra.mxu0 0
    %557 = vmatprep.subr.bf16.mxu0 0
    %558 = vmatpush1.bf16.msra.mxu0 0
    %559 = vmatprep.subr.bf16.mxu0 0
    %560 = vmatpush1.bf16.msra.mxu0 0
    %561 = vmatprep.subr.bf16.mxu0 0
    %562 = vmatpush1.bf16.msra.mxu0 0
    %563 = vmatprep.subr.bf16.mxu0 0
    %564 = vmatpush1.bf16.msra.mxu0 0
    %565 = vmatprep.mubr.bf16.mxu0 0
    %566 = vmatmul.mubr.bf16.gmra.mrb[0].mxu0 %v531
    %v567 = vpop.f32.mrb[0].mxu0
    %v568 = vadd.f32 %v528, %v567
    %v569 = vpop.f32.mrb[0].mxu0
    %v570 = vpop.f32.mrb[0].mxu0
    %v571 = vadd.f32 %v528, %v570
    %v572 = vpop.f32.mrb[0].mxu0
    %573 = vdwg.mxu0
    %v574 = vadd.f32 %v232, %v568
    %v575 = vadd.f32 %v235, %v571
    %v576 = vld [vmem:[%s10] sm:$0x1]
    %v577 = vld [vmem:[%s11] sm:$0x1]
    %v578 = vld [vmem:[#allocation10] sm:$0xf]
    %v579 = vld [vmem:[#allocation10 + $0x4] sm:$0xf]
    %v580 = vld [vmem:[#allocation10 + $0x8] sm:$0xf]
    %v581 = vld [vmem:[#allocation10 + $0xc] sm:$0xf]
    %v582 = vld [vmem:[#allocation10 + $0x10] sm:$0xf]
    %v583 = vld [vmem:[#allocation10 + $0x14] sm:$0xf]
    %v584 = vld [vmem:[#allocation10 + $0x18] sm:$0xf]
    %v585 = vld [vmem:[#allocation10 + $0x1c] sm:$0xf]
    %v586 = vld [vmem:[#allocation10 + $0x20] sm:$0xf]
    %v587 = vld [vmem:[#allocation10 + $0x24] sm:$0xf]
    %v588 = vld [vmem:[#allocation10 + $0x28] sm:$0xf]
    %v589 = vld [vmem:[#allocation10 + $0x2c] sm:$0xf]
    %v590 = vld [vmem:[#allocation10 + $0x30] sm:$0xf]
    %v591 = vld [vmem:[#allocation10 + $0x34] sm:$0xf]
    %v592 = vld [vmem:[#allocation10 + $0x38] sm:$0xf]
    %v593 = vld [vmem:[#allocation10 + $0x3c] sm:$0xf]
    %v594 = vld [vmem:[%s13] sm:$0x1]
    %v595 = vld [vmem:[%s14] sm:$0x1]
    %v596 = vadd.f32 %v574, %v575
    %v597 = vrot.slane %v596, 4
    %v598 = vadd.f32 %v596, %v597
    %v599 = vrot.slane %v598, 2
    %v600 = vadd.f32 %v598, %v599
    %v601 = vrot.slane %v600, 1
    %v602 = vadd.f32 %v600, %v601
    %v603 = vmul.f32 %v602, %v265
    %v604 = vsub.f32 %v574, %v603
    %v605 = vsub.f32 %v575, %v603
    %v606 = vmul.f32 %v604, %v604
    %v607 = vmul.f32 %v605, %v605
    %v608 = vadd.f32 %v606, %v607
    %v609 = vrot.slane %v608, 4
    %v610 = vadd.f32 %v608, %v609
    %v611 = vrot.slane %v610, 2
    %v612 = vadd.f32 %v610, %v611
    %v613 = vrot.slane %v612, 1
    %v614 = vadd.f32 %v612, %v613
    %v615 = vmul.f32 %v614, %v265
    %v616 = vadd.f32 %v615, 1e-05
    %v617 = vrsqrt.pop %v616
    %v618 = vmul.f32 %v604, %v617
    %v619 = vmul.f32 %v605, %v617
    %v621 = vlaneseq
    %v622 = vshrl.u32 %v621, 7
    %v623 = vsub.s32 0, %v622
    %v624 = vrot.slane %v576, %v623
    %v626 = vmul.f32 %v618, %v624
    %v627 = vmul.f32 %v619, %v624
    %v629 = vlaneseq
    %v630 = vshrl.u32 %v629, 7
    %v631 = vsub.s32 0, %v630
    %v632 = vrot.slane %v577, %v631
    %v634 = vadd.f32 %v626, %v632
    %v635 = vadd.f32 %v627, %v632
    %vm636 = vcmp.ge.f32.partialorder %v634, 0.0
    %vm637 = vcmp.ge.f32.partialorder %v635, 0.0
    %v638 = vmul.f32 %v634, 0.01
    %v639 = vmul.f32 %v635, 0.01
    %v640 = vsel %vm636, %v634, %v638
    %v641 = vsel %vm637, %v635, %v639
    %v642 = vpack.c.bf16 %v641, %v640
    %v659 = vunpack.c.l.b16 %v578
    %v660 = vunpack.c.l.b16 %v579
    %v661 = vunpack.c.l.b16 %v580
    %v662 = vunpack.c.l.b16 %v581
    %v663 = vunpack.c.l.b16 %v582
    %v664 = vunpack.c.l.b16 %v583
    %v665 = vunpack.c.l.b16 %v584
    %v666 = vunpack.c.l.b16 %v585
    %v667 = vunpack.c.l.b16 %v586
    %v668 = vunpack.c.l.b16 %v587
    %v669 = vunpack.c.l.b16 %v588
    %v670 = vunpack.c.l.b16 %v589
    %v671 = vunpack.c.l.b16 %v590
    %v672 = vunpack.c.l.b16 %v591
    %v673 = vunpack.c.l.b16 %v592
    %v674 = vunpack.c.l.b16 %v593
    %v675 = vpack.c.b16 %v660, %v659
    %v676 = vpack.c.b16 %v662, %v661
    %v677 = vpack.c.b16 %v664, %v663
    %v678 = vpack.c.b16 %v666, %v665
    %v679 = vpack.c.b16 %v668, %v667
    %v680 = vpack.c.b16 %v670, %v669
    %v681 = vpack.c.b16 %v672, %v671
    %v682 = vpack.c.b16 %v674, %v673
    %691 = vmatprep.subr.bf16.mxu0 0
    %692 = vmatpush1.bf16.msra.mxu0 %v675
    %693 = vmatprep.subr.bf16.mxu0 0
    %694 = vmatpush1.bf16.msra.mxu0 %v676
    %695 = vmatprep.subr.bf16.mxu0 0
    %696 = vmatpush1.bf16.msra.mxu0 %v677
    %697 = vmatprep.subr.bf16.mxu0 0
    %698 = vmatpush1.bf16.msra.mxu0 %v678
    %699 = vmatprep.subr.bf16.mxu0 0
    %700 = vmatpush1.bf16.msra.mxu0 %v679
    %701 = vmatprep.subr.bf16.mxu0 0
    %702 = vmatpush1.bf16.msra.mxu0 %v680
    %703 = vmatprep.subr.bf16.mxu0 0
    %704 = vmatpush1.bf16.msra.mxu0 %v681
    %705 = vmatprep.subr.bf16.mxu0 0
    %706 = vmatpush1.bf16.msra.mxu0 %v682
    %707 = vmatprep.subr.bf16.mxu0 0
    %708 = vmatpush1.bf16.msra.mxu0 0
    %709 = vmatprep.subr.bf16.mxu0 0
    %710 = vmatpush1.bf16.msra.mxu0 0
    %711 = vmatprep.subr.bf16.mxu0 0
    %712 = vmatpush1.bf16.msra.mxu0 0
    %713 = vmatprep.subr.bf16.mxu0 0
    %714 = vmatpush1.bf16.msra.mxu0 0
    %715 = vmatprep.subr.bf16.mxu0 0
    %716 = vmatpush1.bf16.msra.mxu0 0
    %717 = vmatprep.subr.bf16.mxu0 0
    %718 = vmatpush1.bf16.msra.mxu0 0
    %719 = vmatprep.subr.bf16.mxu0 0
    %720 = vmatpush1.bf16.msra.mxu0 0
    %721 = vmatprep.subr.bf16.mxu0 0
    %722 = vmatpush1.bf16.msra.mxu0 0
    %723 = vmatprep.mubr.bf16.mxu0 0
    %724 = vmatmul.mubr.bf16.gmra.mrb[0].mxu0 %v642
    %v725 = vpop.f32.mrb[0].mxu0
    %v726 = vadd.f32 0.0, %v725
    %v727 = vpop.f32.mrb[0].mxu0
    %v728 = vpop.f32.mrb[0].mxu0
    %v729 = vadd.f32 0.0, %v728
    %v730 = vpop.f32.mrb[0].mxu0
    %731 = vdwg.mxu0
    %732 = vmatprep.subr.mxu0 0.0
    %733 = vmatpush1.xpose.msra.mxu0 %v726
    %734 = vmatprep.subr.mxu0 0.0
    %735 = vmatpush1.xpose.msra.mxu0 %v729
    %736 = vmatprep.subr.mxu0 0.0
    %737 = vmatpush1.xpose.msra.mxu0 0.0
    %738 = vmatprep.subr.mxu0 0.0
    %739 = vmatpush1.xpose.msra.mxu0 0.0
    %740 = vmatprep.subr.mxu0 0.0
    %741 = vmatpush1.xpose.msra.mxu0 0.0
    %742 = vmatprep.subr.mxu0 0.0
    %743 = vmatpush1.xpose.msra.mxu0 0.0
    %744 = vmatprep.subr.mxu0 0.0
    %745 = vmatpush1.xpose.msra.mxu0 0.0
    %746 = vmatprep.subr.mxu0 0.0
    %747 = vmatpush1.xpose.msra.mxu0 0.0
    %748 = vmatprep.subr.mxu0 0.0
    %749 = vmatpush1.xpose.msra.mxu0 0.0
    %750 = vmatprep.subr.mxu0 0.0
    %751 = vmatpush1.xpose.msra.mxu0 0.0
    %752 = vmatprep.subr.mxu0 0.0
    %753 = vmatpush1.xpose.msra.mxu0 0.0
    %754 = vmatprep.subr.mxu0 0.0
    %755 = vmatpush1.xpose.msra.mxu0 0.0
    %756 = vmatprep.subr.mxu0 0.0
    %757 = vmatpush1.xpose.msra.mxu0 0.0
    %758 = vmatprep.subr.mxu0 0.0
    %759 = vmatpush1.xpose.msra.mxu0 0.0
    %760 = vmatprep.subr.mxu0 0.0
    %761 = vmatpush1.xpose.msra.mxu0 0.0
    %762 = vmatprep.subr.mxu0 0.0
    %763 = vmatpush1.xpose.msra.mxu0 0.0
    %764 = vmatprep.subr.mxu0 0.0
    %765 = vmatpush1.xpose.msra.mxu0 0.0
    %766 = vmatprep.subr.mxu0 0.0
    %767 = vmatpush1.xpose.msra.mxu0 0.0
    %768 = vmatprep.subr.mxu0 0.0
    %769 = vmatpush1.xpose.msra.mxu0 0.0
    %770 = vmatprep.subr.mxu0 0.0
    %771 = vmatpush1.xpose.msra.mxu0 0.0
    %772 = vmatprep.subr.mxu0 0.0
    %773 = vmatpush1.xpose.msra.mxu0 0.0
    %774 = vmatprep.subr.mxu0 0.0
    %775 = vmatpush1.xpose.msra.mxu0 0.0
    %776 = vmatprep.subr.mxu0 0.0
    %777 = vmatpush1.xpose.msra.mxu0 0.0
    %778 = vmatprep.subr.mxu0 0.0
    %779 = vmatpush1.xpose.msra.mxu0 0.0
    %780 = vmatprep.subr.mxu0 0.0
    %781 = vmatpush1.xpose.msra.mxu0 0.0
    %782 = vmatprep.subr.mxu0 0.0
    %783 = vmatpush1.xpose.msra.mxu0 0.0
    %784 = vmatprep.subr.mxu0 0.0
    %785 = vmatpush1.xpose.msra.mxu0 0.0
    %786 = vmatprep.subr.mxu0 0.0
    %787 = vmatpush1.xpose.msra.mxu0 0.0
    %788 = vmatprep.subr.mxu0 0.0
    %789 = vmatpush1.xpose.msra.mxu0 0.0
    %790 = vmatprep.subr.mxu0 0.0
    %791 = vmatpush1.xpose.msra.mxu0 0.0
    %792 = vmatprep.subr.mxu0 0.0
    %793 = vmatpush1.xpose.msra.mxu0 0.0
    %794 = vmatprep.subr.mxu0 0.0
    %795 = vmatpush1.xpose.msra.mxu0 0.0
    %796 = vmatprep.mubr.f32.mxu0 0.0
    %797 = vmatmul.mubr.f32.gmra.mrb[0].mxu0 %v594
    %v798 = vpop.f32.mrb[0].mxu0
    %v799 = vadd.f32 0.0, %v798
    %v800 = vpop.f32.mrb[0].mxu0
    %801 = vdwg.mxu0
    %v802 = vmul.f32 %v726, %v469
    %v803 = vmul.f32 %v729, %v469
    %805 = vset.pattern.permute.xlu0 32
    %806 = vperm.xlu0 %805, %v726
    %v807 = vpop.permute.xlu0 %806
    %810 = vset.pattern.permute.xlu0 32
    %811 = vperm.xlu0 %810, %v729
    %v812 = vpop.permute.xlu0 %811
    %v814 = vlaneseq
    %v815 = vshrl.u32 %v814, 7
    %v816 = vsub.s32 0, %v815
    %v817 = vrot.slane %v799, %v816
    %v818 = vadd.f32 %v807, %v817
    %v819 = vadd.f32 %v812, %v817
    %vm820 = vcmp.ge.f32.partialorder %v818, 0.0
    %vm821 = vcmp.ge.f32.partialorder %v819, 0.0
    %v822 = vmul.f32 %v818, 0.2
    %v823 = vmul.f32 %v819, 0.2
    %v824 = vsel %vm820, %v818, %v822
    %v825 = vsel %vm821, %v819, %v823
    %v826 = vadd.f32 %v824, %v495
    %v827 = vadd.f32 %v825, %v496
    %v828 = vsel %vm499, %v826, -inf
    %829 = vmax.xlane.f32.xlu0 %v828
    %v830 = vpop.xlane.xlu0 %829
    %v831 = vsel %vm499, %v827, -inf
    %832 = vmax.xlane.f32.xlu0 %v831
    %v833 = vpop.xlane.xlu0 %832
    %v834 = vsub.f32 %v826, %v830
    %v835 = vsub.f32 %v827, %v833
    %v836 = vmul.f32 %v834, 1.442695
    %v837 = vpow.pop %v836
    %v838 = vmul.f32 %v835, 1.442695
    %v839 = vpow.pop %v838
    %v840 = vsel %vm499, %v837, 0.0
    %841 = vadd.xlane.f32.xlu0 %v840
    %v842 = vpop.xlane.xlu0 %841
    %v843 = vsel %vm499, %v839, 0.0
    %844 = vadd.xlane.f32.xlu0 %v843
    %v845 = vpop.xlane.xlu0 %844
    %v846 = vrcp.pop %v842
    %v847 = vrcp.pop %v845
    %v848 = vmul.f32 %v837, %v846
    %v849 = vmul.f32 %v839, %v847
    %v850 = vpack.c.bf16 %v849, %v848
    %v851 = vpack.c.bf16 %v803, %v802
    %v853 = vlaneseq
    %v854 = vshrl.u32 %v853, 7
    %v855 = vsub.s32 0, %v854
    %v856 = vrot.slane %v595, %v855
    %v859 = vsel %vm499, %v850, 0
    %861 = vmatprep.subr.bf16.mxu0 0
    %862 = vmatpush1.bf16.msra.mxu0 %v851
    %863 = vmatprep.subr.bf16.mxu0 0
    %864 = vmatpush1.bf16.msra.mxu0 0
    %865 = vmatprep.subr.bf16.mxu0 0
    %866 = vmatpush1.bf16.msra.mxu0 0
    %867 = vmatprep.subr.bf16.mxu0 0
    %868 = vmatpush1.bf16.msra.mxu0 0
    %869 = vmatprep.subr.bf16.mxu0 0
    %870 = vmatpush1.bf16.msra.mxu0 0
    %871 = vmatprep.subr.bf16.mxu0 0
    %872 = vmatpush1.bf16.msra.mxu0 0
    %873 = vmatprep.subr.bf16.mxu0 0
    %874 = vmatpush1.bf16.msra.mxu0 0
    %875 = vmatprep.subr.bf16.mxu0 0
    %876 = vmatpush1.bf16.msra.mxu0 0
    %877 = vmatprep.subr.bf16.mxu0 0
    %878 = vmatpush1.bf16.msra.mxu0 0
    %879 = vmatprep.subr.bf16.mxu0 0
    %880 = vmatpush1.bf16.msra.mxu0 0
    %881 = vmatprep.subr.bf16.mxu0 0
    %882 = vmatpush1.bf16.msra.mxu0 0
    %883 = vmatprep.subr.bf16.mxu0 0
    %884 = vmatpush1.bf16.msra.mxu0 0
    %885 = vmatprep.subr.bf16.mxu0 0
    %886 = vmatpush1.bf16.msra.mxu0 0
    %887 = vmatprep.subr.bf16.mxu0 0
    %888 = vmatpush1.bf16.msra.mxu0 0
    %889 = vmatprep.subr.bf16.mxu0 0
    %890 = vmatpush1.bf16.msra.mxu0 0
    %891 = vmatprep.subr.bf16.mxu0 0
    %892 = vmatpush1.bf16.msra.mxu0 0
    %893 = vmatprep.mubr.bf16.mxu0 0
    %894 = vmatmul.mubr.bf16.gmra.mrb[0].mxu0 %v859
    %v895 = vpop.f32.mrb[0].mxu0
    %v896 = vadd.f32 %v856, %v895
    %v897 = vpop.f32.mrb[0].mxu0
    %v898 = vpop.f32.mrb[0].mxu0
    %v899 = vadd.f32 %v856, %v898
    %v900 = vpop.f32.mrb[0].mxu0
    %901 = vdwg.mxu0
    %v902 = vadd.f32 %v574, %v896
    %v903 = vadd.f32 %v575, %v899
    %v904 = vpack.c.bf16 %v903, %v902
    %v906 = vunpack.c.l.b16 %v904
    %v907 = vunpack.c.h.b16 %v904
    %v908 = vpack.c.b16 %v906, %v906
    %v909 = vpack.c.b16 %v907, %v907
    %912 = vst [vmem:[#allocation11] sm:$0xf] %v908
    %913 = vst [vmem:[#allocation11 + $0x4] sm:$0xf] %v909
    // Predicated region
    $region82: #{tpu_custom_call.1} parent=1 // pred_check
      _
    $region83: #{tpu_custom_call.1} parent=1 // pred_check_branch
      %915 = sbr.rel (0) target = $region85
    $region84: #{tpu_custom_call.1} parent=1 // pred_region
      %s917 = ssub.s32 128, 128
      %918 = vsyncadd [#allocation4], %s917
      %s919 = sshll.u32 [#allocation11], 4
      %s920 = int_to_ptr.vmem [resolvable:$true] %s919
      %925 = dma.vmem_to_hbm [thread:$0]  %s920, 128, %s15, [#allocation4], 64, 64, 4
    $region85: #{tpu_custom_call.1} parent=1 // pred_fallthru
      _
    // Predicated region
    $region86: #{tpu_custom_call.1} parent=1 // pred_check
      _
    $region87: #{tpu_custom_call.1} parent=1 // pred_check_branch
      %927 = sbr.rel (0) target = $region89
    $region88: #{tpu_custom_call.1} parent=1 // pred_region
      %928 = dma.done [#allocation4], 128
    $region89: #{tpu_custom_call.1} parent=1 // pred_fallthru
      _
    %929 = vsyncpa [#allocation3], 1
    %930 = vsyncpa [#allocation6], 1
    %931 = vsyncpa [#allocation9], 1
    %932 = vsyncpa [#allocation4], 1

</llo_original>
